<compile_context>
chip_gen: v7x
topology: tpu7x:2x2x1
jax: 0.10.0
libtpu: 0.0.40
codegen_flags: <defaults>
</compile_context>

<pallas_src>
import functools

import jax
import jax.numpy as jnp
from jax import lax
from jax.experimental import pallas as pl
from jax.experimental.pallas import tpu as pltpu


# ------------------------------ per-generation constants ------------------------------

def _hw_constants():
    """VMEM limit and tile targets derived from the local chip (v5e/v6e: 128 MiB VMEM,
    v7x: 64 MiB).  Falls back to v7x-safe values if the query is unavailable."""
    try:
        cap = int(pltpu.get_tpu_info().vmem_capacity_bytes)
    except Exception:
        cap = 64 * 1024 * 1024
    vmem_limit = min(96 * 1024 * 1024, int(cap * 0.70))
    big_vmem = cap >= 100 * 1024 * 1024
    tm = 512 if big_vmem else 256
    tn = 512 if big_vmem else 256
    tk = 512
    return vmem_limit, tm, tn, tk


VMEM_LIMIT, TM, TN, TK = _hw_constants()
KV_TILE = 512                          # flash-attention key/value tile target


def _tile(dim, target, align):
    """Largest divisor of `dim` that is <= `target` and a multiple of `align`.
    Full dim (always legal) if dim <= target or no aligned divisor exists.
    # TODO(synk): pad M = B*S in glue for shapes with no aligned divisor so the
    # working set stays bounded on v7x."""
    if dim <= target:
        return dim
    cand = (min(target, dim) // align) * align
    while cand >= align:
        if dim % cand == 0:
            return cand
        cand -= align
    return dim


def _kv_tile(S, target=KV_TILE):
    """Full S when short, else the largest multiple-of-128 divisor <= target."""
    if S <= target:
        return S
    cand = (target // 128) * 128
    while cand >= 128:
        if S % cand == 0:
            return cand
        cand -= 128
    return S


# ------------------------------ tiled linear (+bias, +act) ------------------------------

def _linear_kernel(x_ref, w_ref, b_ref, o_ref, acc_ref, *, act):
    k = pl.program_id(2)

    @pl.when(k == 0)
    def _():
        acc_ref[...] = jnp.zeros_like(acc_ref)

    acc_ref[...] += jnp.dot(x_ref[...], w_ref[...], preferred_element_type=jnp.float32)

    @pl.when(k == pl.num_programs(2) - 1)
    def _():
        y = acc_ref[...] + b_ref[...]
        o_ref[...] = act(y).astype(o_ref.dtype)


def linear(x, w, b, act=lambda y: y, out_dtype=jnp.bfloat16, transcendentals=0):
    """act(x @ w + b). x:(M,K) bf16, w:(K,N) bf16, b:(N,) f32 -> (M,N) out_dtype."""
    M, K = x.shape
    N = w.shape[1]
    tm, tn, tk = _tile(M, TM, 8), _tile(N, TN, 128), _tile(K, TK, 128)
    bytes_accessed = (x.size * x.dtype.itemsize + w.size * w.dtype.itemsize
                      + 4 * N + M * N * jnp.dtype(out_dtype).itemsize)
    return pl.pallas_call(
        functools.partial(_linear_kernel, act=act),
        out_shape=jax.ShapeDtypeStruct((M, N), out_dtype),
        grid=(M // tm, N // tn, K // tk),
        in_specs=[pl.BlockSpec((tm, tk), lambda i, j, k: (i, k)),
                  pl.BlockSpec((tk, tn), lambda i, j, k: (k, j)),
                  pl.BlockSpec((1, tn), lambda i, j, k: (0, j))],
        out_specs=pl.BlockSpec((tm, tn), lambda i, j, k: (i, j)),
        scratch_shapes=[pltpu.VMEM((tm, tn), jnp.float32)],
        compiler_params=pltpu.CompilerParams(
            dimension_semantics=("parallel", "parallel", "arbitrary"),
            vmem_limit_bytes=VMEM_LIMIT),
        cost_estimate=pl.CostEstimate(flops=2 * M * N * K,
                                      transcendentals=transcendentals,
                                      bytes_accessed=bytes_accessed),
    )(x, w, b.reshape(1, N))


# ------------------------ fused Q/K/V projection (per-head output) ------------------------

def _qkv_kernel(x_ref, w_ref, b_ref, o_ref, acc_ref, *, nH, dH):
    # x:(tm,tk) bf16 | w:(1,tk,H) bf16 | b:(1,1,H) f32 | o:(1,nH,tm,dH) bf16 | acc:(tm,H) f32
    kstep = pl.program_id(2)

    @pl.when(kstep == 0)
    def _():
        acc_ref[...] = jnp.zeros_like(acc_ref)

    acc_ref[...] += jnp.dot(x_ref[...], w_ref[0], preferred_element_type=jnp.float32)

    @pl.when(kstep == pl.num_programs(2) - 1)
    def _():
        y = (acc_ref[...] + b_ref[0]).astype(o_ref.dtype)        # (tm, H), full-width MXU
        # Split heads at the finalize only (once per output tile, not per K step).
        for h in range(nH):
            o_ref[0, h] = y[:, h * dH:(h + 1) * dH]


def qkv_proj(x, w3, b3, nH, dH):
    """Fused Q/K/V projection producing per-head layout.

    x:(M,K) bf16, w3:(3,K,H) bf16 (softmax scale pre-folded into the Q slice),
    b3:(3,1,H) f32 -> (3, nH, M, dH) bf16."""
    M, K = x.shape
    H = w3.shape[2]
    tm, tk = _tile(M, TM, 8), _tile(K, TK, 128)
    bytes_accessed = 2 * (3 * x.size + w3.size + 3 * M * H) + 4 * 3 * H
    return pl.pallas_call(
        functools.partial(_qkv_kernel, nH=nH, dH=dH),
        out_shape=jax.ShapeDtypeStruct((3, nH, M, dH), jnp.bfloat16),
        grid=(3, M // tm, K // tk),
        in_specs=[pl.BlockSpec((tm, tk), lambda q, i, k: (i, k)),
                  pl.BlockSpec((1, tk, H), lambda q, i, k: (q, k, 0)),
                  pl.BlockSpec((1, 1, H), lambda q, i, k: (q, 0, 0))],
        out_specs=pl.BlockSpec((1, nH, tm, dH), lambda q, i, k: (q, 0, i, 0)),
        scratch_shapes=[pltpu.VMEM((tm, H), jnp.float32)],
        compiler_params=pltpu.CompilerParams(
            dimension_semantics=("parallel", "parallel", "arbitrary"),
            vmem_limit_bytes=VMEM_LIMIT),
        cost_estimate=pl.CostEstimate(flops=2 * M * 3 * H * K, transcendentals=0,
                                      bytes_accessed=bytes_accessed),
    )(x, w3, b3)


# --------------------------- flash attention (online softmax) ---------------------------

def _flash_attn_kernel(q_ref, k_ref, v_ref, mask_ref, o_ref, m_sc, l_sc, acc_sc):
    # q:(1,1,1,S,dH) | k/v:(1,1,1,Tkv,dH) | mask:(1,1,Tkv) f32 additive | o:(1,1,S,dH)
    # scratch: m,l:(S,1) f32, acc:(S,dH) f32  -- persist across the kv grid axis.
    kv = pl.program_id(2)

    @pl.when(kv == 0)
    def _():
        m_sc[...] = jnp.full_like(m_sc, -jnp.inf)
        l_sc[...] = jnp.zeros_like(l_sc)
        acc_sc[...] = jnp.zeros_like(acc_sc)

    q = q_ref[0, 0, 0]                                   # (S, dH)  scale already in q weights
    k = k_ref[0, 0, 0]                                   # (Tkv, dH)
    v = v_ref[0, 0, 0]
    # q @ k^T without an explicit transpose: contract the dH lane dims directly.
    s = lax.dot_general(q, k, (((1,), (1,)), ((), ())),
                        preferred_element_type=jnp.float32)          # (S, Tkv) f32
    s = s + mask_ref[0]                                  # (1, Tkv) broadcasts over query rows

    m_prev = m_sc[...]
    m_new = jnp.maximum(m_prev, jnp.max(s, axis=-1, keepdims=True))
    alpha = jnp.exp(m_prev - m_new)
    p = jnp.exp(s - m_new)
    l_sc[...] = alpha * l_sc[...] + jnp.sum(p, axis=-1, keepdims=True)
    acc_sc[...] = alpha * acc_sc[...] + jnp.dot(p.astype(v.dtype), v,
                                                preferred_element_type=jnp.float32)
    m_sc[...] = m_new

    @pl.when(kv == pl.num_programs(2) - 1)
    def _():
        o_ref[0, 0] = (acc_sc[...] / l_sc[...]).astype(o_ref.dtype)  # exact normalization


def attention(qkv, ext_mask, B, S, nH, dH):
    """qkv: (3, nH, B, S, dH) bf16; ext_mask: (B, 1, S) f32 additive.
    Grid = (batch, head, kv-tile); Q stays resident across the kv axis.
    # TODO(synk): also tile the query axis for very long S (> ~8K) so the resident
    # Q/acc and (S, Tkv) score tile stay within VMEM on v7x."""
    tkv = _kv_tile(S)
    nkv = S // tkv
    bytes_accessed = 2 * (3 * B * S * nH * dH + B * S * nH * dH) + 4 * B * S
    return pl.pallas_call(
        _flash_attn_kernel,
        out_shape=jax.ShapeDtypeStruct((nH, B, S, dH), jnp.bfloat16),
        grid=(B, nH, nkv),
        in_specs=[pl.BlockSpec((1, 1, 1, S, dH), lambda b, h, kv: (0, h, b, 0, 0)),
                  pl.BlockSpec((1, 1, 1, tkv, dH), lambda b, h, kv: (1, h, b, kv, 0)),
                  pl.BlockSpec((1, 1, 1, tkv, dH), lambda b, h, kv: (2, h, b, kv, 0)),
                  pl.BlockSpec((1, 1, tkv), lambda b, h, kv: (b, 0, kv))],
        out_specs=pl.BlockSpec((1, 1, S, dH), lambda b, h, kv: (h, b, 0, 0)),
        scratch_shapes=[pltpu.VMEM((S, 1), jnp.float32),
                        pltpu.VMEM((S, 1), jnp.float32),
                        pltpu.VMEM((S, dH), jnp.float32)],
        compiler_params=pltpu.CompilerParams(
            dimension_semantics=("parallel", "parallel", "arbitrary"),
            vmem_limit_bytes=VMEM_LIMIT),
        cost_estimate=pl.CostEstimate(flops=4 * B * nH * S * S * dH,
                                      transcendentals=B * nH * S * S,
                                      bytes_accessed=bytes_accessed),
    )(qkv, qkv, qkv, ext_mask)


# -------- output projection: per-head ctx, head on the K axis, + bias/residual/LN --------

def _linear_heads_res_ln_kernel(x_ref, w_ref, b_ref, r_ref, g_ref, bb_ref, o_ref,
                                acc_ref, *, eps):
    h = pl.program_id(1)

    @pl.when(h == 0)
    def _():
        acc_ref[...] = jnp.zeros_like(acc_ref)

    # Contraction depth per step is dH (shallow for the MXU, but the kernel is
    # weight-stream bound at inference M, and this avoids any merge-heads transpose).
    acc_ref[...] += jnp.dot(x_ref[0], w_ref[0], preferred_element_type=jnp.float32)

    @pl.when(h == pl.num_programs(1) - 1)
    def _():
        y = acc_ref[...] + b_ref[...] + r_ref[...].astype(jnp.float32)
        mu = jnp.mean(y, axis=-1, keepdims=True)
        var = jnp.mean(jnp.square(y - mu), axis=-1, keepdims=True)
        o_ref[...] = ((y - mu) * lax.rsqrt(var + eps) * g_ref[...] + bb_ref[...]).astype(o_ref.dtype)


def linear_heads_residual_ln(x, w, b, res, gamma, beta, eps=1e-12):
    """LayerNorm(concat_heads(x) @ o_w + b + res) with x:(nH,M,dH), w:(nH,dH,H)."""
    nH, M, dH = x.shape
    H = w.shape[2]
    tm = _tile(M, TM, 8)
    bytes_accessed = 2 * (x.size + w.size + res.size + M * H) + 16 * H
    return pl.pallas_call(
        functools.partial(_linear_heads_res_ln_kernel, eps=eps),
        out_shape=jax.ShapeDtypeStruct((M, H), jnp.bfloat16),
        grid=(M // tm, nH),
        in_specs=[pl.BlockSpec((1, tm, dH), lambda i, h: (h, i, 0)),
                  pl.BlockSpec((1, dH, H), lambda i, h: (h, 0, 0)),
                  pl.BlockSpec((1, H), lambda i, h: (0, 0)),
                  pl.BlockSpec((tm, H), lambda i, h: (i, 0)),
                  pl.BlockSpec((1, H), lambda i, h: (0, 0)),
                  pl.BlockSpec((1, H), lambda i, h: (0, 0))],
        out_specs=pl.BlockSpec((tm, H), lambda i, h: (i, 0)),
        scratch_shapes=[pltpu.VMEM((tm, H), jnp.float32)],
        compiler_params=pltpu.CompilerParams(
            dimension_semantics=("parallel", "arbitrary"),
            vmem_limit_bytes=VMEM_LIMIT),
        cost_estimate=pl.CostEstimate(flops=2 * M * nH * dH * H, transcendentals=0,
                                      bytes_accessed=bytes_accessed),
    )(x, w, b.reshape(1, H), res, gamma.reshape(1, H), beta.reshape(1, H))


# ---------------------- matmul with fused bias + residual + LayerNorm ----------------------

def _linear_res_ln_kernel(x_ref, w_ref, b_ref, r_ref, g_ref, bb_ref, o_ref, acc_ref, *, eps):
    k = pl.program_id(1)

    @pl.when(k == 0)
    def _():
        acc_ref[...] = jnp.zeros_like(acc_ref)

    acc_ref[...] += jnp.dot(x_ref[...], w_ref[...], preferred_element_type=jnp.float32)

    @pl.when(k == pl.num_programs(1) - 1)
    def _():
        y = acc_ref[...] + b_ref[...] + r_ref[...].astype(jnp.float32)
        mu = jnp.mean(y, axis=-1, keepdims=True)
        var = jnp.mean(jnp.square(y - mu), axis=-1, keepdims=True)
        o_ref[...] = ((y - mu) * lax.rsqrt(var + eps) * g_ref[...] + bb_ref[...]).astype(o_ref.dtype)


def linear_residual_ln(x, w, b, res, gamma, beta, eps=1e-12):
    """LayerNorm(x @ w + b + res).  LN needs the whole hidden dim, so N stays un-tiled."""
    M, K = x.shape
    N = w.shape[1]
    tm, tk = _tile(M, TM, 8), _tile(K, TK, 128)
    bytes_accessed = 2 * (x.size + w.size + res.size + M * N) + 16 * N
    return pl.pallas_call(
        functools.partial(_linear_res_ln_kernel, eps=eps),
        out_shape=jax.ShapeDtypeStruct((M, N), jnp.bfloat16),
        grid=(M // tm, K // tk),
        in_specs=[pl.BlockSpec((tm, tk), lambda i, k: (i, k)),
                  pl.BlockSpec((tk, N), lambda i, k: (k, 0)),
                  pl.BlockSpec((1, N), lambda i, k: (0, 0)),
                  pl.BlockSpec((tm, N), lambda i, k: (i, 0)),
                  pl.BlockSpec((1, N), lambda i, k: (0, 0)),
                  pl.BlockSpec((1, N), lambda i, k: (0, 0))],
        out_specs=pl.BlockSpec((tm, N), lambda i, k: (i, 0)),
        scratch_shapes=[pltpu.VMEM((tm, N), jnp.float32)],
        compiler_params=pltpu.CompilerParams(
            dimension_semantics=("parallel", "arbitrary"),
            vmem_limit_bytes=VMEM_LIMIT),
        cost_estimate=pl.CostEstimate(flops=2 * M * N * K, transcendentals=0,
                                      bytes_accessed=bytes_accessed),
    )(x, w, b.reshape(1, N), res, gamma.reshape(1, N), beta.reshape(1, N))


# ------------------------------ standalone LayerNorm (embeddings) ------------------------------

def _ln_kernel(x_ref, g_ref, b_ref, o_ref, *, eps):
    x = x_ref[...].astype(jnp.float32)
    mu = jnp.mean(x, axis=-1, keepdims=True)
    var = jnp.mean(jnp.square(x - mu), axis=-1, keepdims=True)
    o_ref[...] = ((x - mu) * lax.rsqrt(var + eps) * g_ref[...] + b_ref[...]).astype(o_ref.dtype)


def layer_norm(x, gamma, beta, eps=1e-12, out_dtype=jnp.bfloat16):
    M, H = x.shape
    tm = _tile(M, TM, 8)
    return pl.pallas_call(
        functools.partial(_ln_kernel, eps=eps),
        out_shape=jax.ShapeDtypeStruct((M, H), out_dtype),
        grid=(M // tm,),
        in_specs=[pl.BlockSpec((tm, H), lambda i: (i, 0)),
                  pl.BlockSpec((1, H), lambda i: (0, 0)),
                  pl.BlockSpec((1, H), lambda i: (0, 0))],
        out_specs=pl.BlockSpec((tm, H), lambda i: (i, 0)),
        compiler_params=pltpu.CompilerParams(dimension_semantics=("parallel",),
                                             vmem_limit_bytes=VMEM_LIMIT),
    )(x, gamma.reshape(1, H), beta.reshape(1, H))


# ------------------------------ pooler + classifier + softmax ------------------------------

def _head_kernel(cls_ref, pw_ref, pb_ref, cw_ref, cb_ref, o_ref):
    pooled = jnp.tanh(jnp.dot(cls_ref[...], pw_ref[...],
                              preferred_element_type=jnp.float32) + pb_ref[...])
    logits = jnp.dot(pooled.astype(cw_ref.dtype), cw_ref[...],
                     preferred_element_type=jnp.float32) + cb_ref[...]
    mx = jnp.max(logits, axis=-1, keepdims=True)
    e = jnp.exp(logits - mx)                               # padded classes: exp(-1e30-mx)=0
    o_ref[...] = e / jnp.sum(e, axis=-1, keepdims=True)    # exact div: rows sum to 1


def pooler_classifier_softmax(cls_tok, pw, pb, cw_pad, cb_pad):
    """cw_pad/cb_pad are lane-padded to a multiple of 128; padded logits are -1e30."""
    B, H = cls_tok.shape
    Cp = cw_pad.shape[1]
    return pl.pallas_call(
        _head_kernel,
        out_shape=jax.ShapeDtypeStruct((B, Cp), jnp.float32),
        grid=(1,),
        in_specs=[pl.BlockSpec((B, H), lambda i: (0, 0)),
                  pl.BlockSpec((H, H), lambda i: (0, 0)),
                  pl.BlockSpec((1, H), lambda i: (0, 0)),
                  pl.BlockSpec((H, Cp), lambda i: (0, 0)),
                  pl.BlockSpec((1, Cp), lambda i: (0, 0))],
        out_specs=pl.BlockSpec((B, Cp), lambda i: (0, 0)),
        compiler_params=pltpu.CompilerParams(vmem_limit_bytes=VMEM_LIMIT),
    )(cls_tok, pw, pb.reshape(1, H), cw_pad, cb_pad.reshape(1, Cp))


# ------------------------------ parameters (glue) ------------------------------

def init_params(key, cfg):
    H, I = cfg["hidden"], cfg["intermediate"]
    keys = iter(jax.random.split(key, 64))

    def nrm(shape):
        return 0.02 * jax.random.normal(next(keys), shape, dtype=jnp.float32)

    params = {
        "word_emb": nrm((cfg["vocab"], H)),
        "pos_emb": nrm((cfg["max_pos"], H)),
        "type_emb": nrm((cfg["type_vocab"], H)),
        "emb_ln_g": jnp.ones((H,), jnp.float32),
        "emb_ln_b": jnp.zeros((H,), jnp.float32),
        "layers": [],
        "pooler_w": nrm((H, H)),
        "pooler_b": jnp.zeros((H,), jnp.float32),
        "cls_w": nrm((H, cfg["output_size"])),
        "cls_b": jnp.zeros((cfg["output_size"],), jnp.float32),
    }
    for _ in range(cfg["layers"]):
        params["layers"].append({
            "q_w": nrm((H, H)), "q_b": jnp.zeros((H,), jnp.float32),
            "k_w": nrm((H, H)), "k_b": jnp.zeros((H,), jnp.float32),
            "v_w": nrm((H, H)), "v_b": jnp.zeros((H,), jnp.float32),
            "o_w": nrm((H, H)), "o_b": jnp.zeros((H,), jnp.float32),
            "ln1_g": jnp.ones((H,), jnp.float32), "ln1_b": jnp.zeros((H,), jnp.float32),
            "ff1_w": nrm((H, I)), "ff1_b": jnp.zeros((I,), jnp.float32),
            "ff2_w": nrm((I, H)), "ff2_b": jnp.zeros((H,), jnp.float32),
            "ln2_g": jnp.ones((H,), jnp.float32), "ln2_b": jnp.zeros((H,), jnp.float32),
        })
    return params


def prepare_params(params, cfg):
    """Pre-pack once: bf16 MXU weights, fused QKV stack with 1/sqrt(dH) folded into Q,
    per-head o_w, lane-padded classifier; biases/LN/embeddings stay f32."""
    H, nH = cfg["hidden"], cfg["heads"]
    dH = H // nH
    scale = float(dH) ** -0.5
    bf16 = lambda a: a.astype(jnp.bfloat16)

    C = params["cls_w"].shape[1]
    Cp = ((C + 127) // 128) * 128
    cls_w_pad = jnp.zeros((H, Cp), jnp.float32).at[:, :C].set(params["cls_w"])
    cls_b_pad = jnp.full((Cp,), -1e30, jnp.float32).at[:C].set(params["cls_b"])

    out = {
        "word_emb": params["word_emb"], "pos_emb": params["pos_emb"],
        "type_emb": params["type_emb"],
        "emb_ln_g": params["emb_ln_g"], "emb_ln_b": params["emb_ln_b"],
        "pooler_w": bf16(params["pooler_w"]), "pooler_b": params["pooler_b"],
        "cls_w": bf16(cls_w_pad), "cls_b": cls_b_pad,
        "layers": [],
    }
    for p in params["layers"]:
        out["layers"].append({
            # softmax scale folded into the Q weights/bias (zero runtime cost)
            "qkv_w": bf16(jnp.stack([p["q_w"] * scale, p["k_w"], p["v_w"]])),        # (3, H, H)
            "qkv_b": jnp.stack([p["q_b"] * scale, p["k_b"], p["v_b"]])[:, None, :],   # (3, 1, H)
            "o_w": bf16(p["o_w"].reshape(nH, dH, H)), "o_b": p["o_b"],
            "ln1_g": p["ln1_g"], "ln1_b": p["ln1_b"],
            "ff1_w": bf16(p["ff1_w"]), "ff1_b": p["ff1_b"],
            "ff2_w": bf16(p["ff2_w"]), "ff2_b": p["ff2_b"],
            "ln2_g": p["ln2_g"], "ln2_b": p["ln2_b"],
        })
    return out


# ------------------------------ model forward (glue) ------------------------------

def encoder_layer(x2, ext_mask, p, B, S, H, nH, dH):
    M = B * S
    # Fused QKV projection straight into the per-head layout (no split-heads transpose).
    qkv = qkv_proj(x2, p["qkv_w"], p["qkv_b"], nH, dH).reshape(3, nH, B, S, dH)
    ctx = attention(qkv, ext_mask, B, S, nH, dH).reshape(nH, M, dH)      # bf16, per-head

    # Output projection: head index is the reduction axis; bias + residual + LN fused.
    x2 = linear_heads_residual_ln(ctx, p["o_w"], p["o_b"], x2, p["ln1_g"], p["ln1_b"])

    # TODO(synk): HF BERT uses exact erf GELU; tanh-approx GELU used here (EUP-friendly).
    ff = linear(x2, p["ff1_w"], p["ff1_b"],
                act=lambda y: jax.nn.gelu(y, approximate=True),
                transcendentals=x2.shape[0] * p["ff1_w"].shape[1])
    x2 = linear_residual_ln(ff, p["ff2_w"], p["ff2_b"], x2, p["ln2_g"], p["ln2_b"])
    return x2


def transformer_forward(params, input_ids, attention_mask, cfg):
    B, S = input_ids.shape
    H, nH = cfg["hidden"], cfg["heads"]
    dH = H // nH
    C = cfg["output_size"]

    # Embeddings (gather is glue; kept f32 into the LN kernel).
    we = params["word_emb"][input_ids]                    # (B, S, H)
    pe = params["pos_emb"][jnp.arange(S)]                 # (S, H)
    te = params["type_emb"][0]                            # (H,)  (token_type_ids = 0)
    x = (we + pe[None, :, :] + te[None, None, :]).reshape(B * S, H)
    x2 = layer_norm(x, params["emb_ln_g"], params["emb_ln_b"])           # bf16 (B*S, H)

    # BERT-style additive mask, built once, kept in f32 (no per-head broadcast).
    ext_mask = ((1.0 - attention_mask.astype(jnp.float32)) * -10000.0).reshape(B, 1, S)

    for p in params["layers"]:
        x2 = encoder_layer(x2, ext_mask, p, B, S, H, nH, dH)

    # Pooler + classifier head (Dropout is identity at inference) + Softmax(dim=1).
    cls_tok = x2.reshape(B, S, H)[:, 0, :]                                # (B, H) bf16
    probs = pooler_classifier_softmax(cls_tok, params["pooler_w"], params["pooler_b"],
                                      params["cls_w"], params["cls_b"])   # (B, Cp) f32
    return probs[:, :C]


# ------------------------------ main ------------------------------

if __name__ == "__main__":
    cfg = dict(vocab=100, hidden=32, layers=2, heads=2, intermediate=64,
               max_pos=16, type_vocab=2, output_size=4)

    key = jax.random.PRNGKey(0)
    pkey, ikey = jax.random.split(key)
    params = prepare_params(init_params(pkey, cfg), cfg)

    B, S = 2, 8
    input_ids = jax.random.randint(ikey, (B, S), 0, cfg["vocab"], dtype=jnp.int32)
    attention_mask = jnp.ones((B, S), jnp.int32).at[1, 6:].set(0)   # second example padded

    out = transformer_forward(params, input_ids, attention_mask, cfg)
    out = jax.block_until_ready(out)

    assert out.shape == (B, cfg["output_size"])
    assert bool(jnp.all(jnp.isfinite(out)))
    assert bool(jnp.allclose(jnp.sum(out, axis=1), 1.0, atol=1e-5))  # softmax rows
    print("KERNEL_OK")
</pallas_src>

<mosaic_0001>
module attributes {stable_mosaic.version = 11 : i64} {
  func.func @_ln_kernel(%arg0: i32, %arg1: memref<16x32xf32, #tpu.memory_space<vmem>>, %arg2: memref<1x32xf32, #tpu.memory_space<vmem>>, %arg3: memref<1x32xf32, #tpu.memory_space<vmem>>, %arg4: memref<16x32xbf16, #tpu.memory_space<vmem>>) attributes {dimension_semantics = [#tpu.dimension_semantics<parallel>], iteration_bounds = array<i64: 1>, scalar_prefetch = 0 : i64, scratch_operands = 0 : i64, tpu.core_type = #tpu.core_type<tc>, window_params = [{transform_indices = @transform_0, window_bounds = array<i64: 16, 32>}, {pipeline_mode = #tpu.pipeline_mode<synchronous>, transform_indices = @transform_1, window_bounds = array<i64: 1, 32>}, {pipeline_mode = #tpu.pipeline_mode<synchronous>, transform_indices = @transform_2, window_bounds = array<i64: 1, 32>}, {transform_indices = @transform_3, window_bounds = array<i64: 16, 32>}]} {
    %c0 = arith.constant 0 : index
    %c0_0 = arith.constant 0 : index
    %0 = vector.load %arg1[%c0, %c0_0] : memref<16x32xf32, #tpu.memory_space<vmem>>, vector<16x32xf32>
    %cst = arith.constant dense<0.000000e+00> : vector<16xf32>
    %1 = vector.multi_reduction <add>, %0, %cst [1] : vector<16x32xf32> to vector<16xf32>
    %2 = vector.shape_cast %1 : vector<16xf32> to vector<16x1xf32>
    %cst_1 = arith.constant 3.200000e+01 : f32
    %3 = vector.broadcast %cst_1 : f32 to vector<16x1xf32>
    %4 = arith.divf %2, %3 : vector<16x1xf32>
    %5 = vector.broadcast %4 : vector<16x1xf32> to vector<16x32xf32>
    %6 = arith.subf %0, %5 : vector<16x32xf32>
    %7 = arith.mulf %6, %6 : vector<16x32xf32>
    %cst_2 = arith.constant dense<0.000000e+00> : vector<16xf32>
    %8 = vector.multi_reduction <add>, %7, %cst_2 [1] : vector<16x32xf32> to vector<16xf32>
    %9 = vector.shape_cast %8 : vector<16xf32> to vector<16x1xf32>
    %cst_3 = arith.constant 3.200000e+01 : f32
    %10 = vector.broadcast %cst_3 : f32 to vector<16x1xf32>
    %11 = arith.divf %9, %10 : vector<16x1xf32>
    %12 = vector.broadcast %4 : vector<16x1xf32> to vector<16x32xf32>
    %13 = arith.subf %0, %12 : vector<16x32xf32>
    %cst_4 = arith.constant 9.99999996E-13 : f32
    %14 = vector.broadcast %cst_4 : f32 to vector<16x1xf32>
    %15 = arith.addf %11, %14 : vector<16x1xf32>
    %16 = math.rsqrt %15 : vector<16x1xf32>
    %17 = vector.broadcast %16 : vector<16x1xf32> to vector<16x32xf32>
    %18 = arith.mulf %13, %17 : vector<16x32xf32>
    %c0_5 = arith.constant 0 : index
    %c0_6 = arith.constant 0 : index
    %19 = vector.load %arg2[%c0_5, %c0_6] : memref<1x32xf32, #tpu.memory_space<vmem>>, vector<1x32xf32>
    %20 = vector.broadcast %19 : vector<1x32xf32> to vector<16x32xf32>
    %21 = arith.mulf %18, %20 : vector<16x32xf32>
    %c0_7 = arith.constant 0 : index
    %c0_8 = arith.constant 0 : index
    %22 = vector.load %arg3[%c0_7, %c0_8] : memref<1x32xf32, #tpu.memory_space<vmem>>, vector<1x32xf32>
    %23 = vector.broadcast %22 : vector<1x32xf32> to vector<16x32xf32>
    %24 = arith.addf %21, %23 : vector<16x32xf32>
    %25 = arith.truncf %24 : vector<16x32xf32> to vector<16x32xbf16>
    %c0_9 = arith.constant 0 : index
    %c0_10 = arith.constant 0 : index
    %26 = vector.load %arg4[%c0_9, %c0_10] : memref<16x32xbf16, #tpu.memory_space<vmem>>, vector<16x32xbf16>
    tpu.vector_store %arg4[%c0_9, %c0_10], %25 {strides = array<i32>} : memref<16x32xbf16, #tpu.memory_space<vmem>>, vector<16x32xbf16>,
    return
  }
  func.func @transform_0(%arg0: i32) -> (i32, i32) {
    %c0_i32 = arith.constant 0 : i32
    %c0_i32_0 = arith.constant 0 : i32
    return %arg0, %c0_i32 : i32, i32
  }
  func.func @transform_1(%arg0: i32) -> (i32, i32) {
    %c0_i32 = arith.constant 0 : i32
    %c0_i32_0 = arith.constant 0 : i32
    %c0_i32_1 = arith.constant 0 : i32
    return %c0_i32, %c0_i32_0 : i32, i32
  }
  func.func @transform_2(%arg0: i32) -> (i32, i32) {
    %c0_i32 = arith.constant 0 : i32
    %c0_i32_0 = arith.constant 0 : i32
    %c0_i32_1 = arith.constant 0 : i32
    return %c0_i32, %c0_i32_0 : i32, i32
  }
  func.func @transform_3(%arg0: i32) -> (i32, i32) {
    %c0_i32 = arith.constant 0 : i32
    %c0_i32_0 = arith.constant 0 : i32
    return %arg0, %c0_i32 : i32, i32
  }
}

</mosaic_0001>

<llo_original>
// kernel: tpu_custom_call.1
$region0: #{tpu_custom_call.1}
  #allocation0 [shape = 'u32[]', space=smem, size = 0x4, offset = 0x4, fixed_abs, tag = 'smem constant byte address 0x4 - core index']
  #allocation1 [shape = 'u32[144,128]{1,0:T(1,128)}', space=vmem, size = 0x12000, scoped, tag = 'internal scratch']
  %s0 = inlined_call_operand.hbm [shape: f32[16,32], index: 0, kind: input, shape index: {}]
  %s1 = inlined_call_operand.vmem [shape: f32[1,32], index: 1, kind: input, shape index: {}]
  %s2 = inlined_call_operand.vmem [shape: f32[1,32], index: 2, kind: input, shape index: {}]
  %s3 = inlined_call_operand.hbm [shape: bf16[16,32], index: 3, kind: output, shape index: {}]
  %s4 = sld [smem:[#allocation0]]
  $region26: #{tpu_custom_call.1} parent=0
    _
  %s6 = ssub.s32 1, %s4
  %s7 = scalar_select 0, %s6, %s4
  $region1: #{tpu_custom_call.1} parent=0
    #allocation2 [shape = 'u8[8192]{0}', space=vmem, size = 0x2000, scoped, tag = 'input window, operand 0, single buffered']
    #allocation3 [shape = 's32[1]{0}', space=sflag, size = 0x4, scoped, tag = 'scoped memory for tpu_custom_call.1']
    #allocation4 [shape = 's32[1]{0}', space=sflag, size = 0x4, scoped, tag = 'scoped memory for tpu_custom_call.1']
    #allocation5 [shape = 'u8[4096]{0}', space=vmem, size = 0x1000, scoped, tag = 'output window, operand 0, single buffered']
    %8 = vsyncpa [#allocation3], 0
    %9 = vsyncpa [#allocation4], 0
    // Predicated region
    $region2: #{tpu_custom_call.1} parent=1 // pred_check
      _
    $region3: #{tpu_custom_call.1} parent=1 // pred_check_branch
      %11 = sbr.rel (0) target = $region5
    $region4: #{tpu_custom_call.1} parent=1 // pred_region
      %s13 = ssub.s32 256, 256
      %14 = vsyncadd [#allocation3], %s13
      %s15 = sshll.u32 [#allocation2], 4
      %s16 = int_to_ptr.vmem [resolvable:$true] %s15
      %21 = dma.hbm_to_vmem [thread:$0]  %s0, 256, %s16, [#allocation3], 128, 128, 8
    $region5: #{tpu_custom_call.1} parent=1 // pred_fallthru
      _
    // Predicated region
    $region6: #{tpu_custom_call.1} parent=1 // pred_check
      _
    $region7: #{tpu_custom_call.1} parent=1 // pred_check_branch
      %23 = sbr.rel (0) target = $region9
    $region8: #{tpu_custom_call.1} parent=1 // pred_region
      _
    $region9: #{tpu_custom_call.1} parent=1 // pred_fallthru
      _
    // Predicated region
    $region10: #{tpu_custom_call.1} parent=1 // pred_check
      _
    $region11: #{tpu_custom_call.1} parent=1 // pred_check_branch
      %25 = sbr.rel (0) target = $region13
    $region12: #{tpu_custom_call.1} parent=1 // pred_region
      _
    $region13: #{tpu_custom_call.1} parent=1 // pred_fallthru
      _
    // Predicated region
    $region14: #{tpu_custom_call.1} parent=1 // pred_check
      _
    $region15: #{tpu_custom_call.1} parent=1 // pred_check_branch
      %27 = sbr.rel (0) target = $region17
    $region16: #{tpu_custom_call.1} parent=1 // pred_region
      %28 = dma.done [#allocation3], 256
    $region17: #{tpu_custom_call.1} parent=1 // pred_fallthru
      _
    %v29 = vld [vmem:[#allocation2] sm:$0xff]
    %v30 = vld [vmem:[#allocation2 + $0x8] sm:$0xff]
    %vm31 = vcmask 261120
    %v32 = vsel %vm31, %v29, 0.0
    %33 = vadd.xlane.f32.xlu0 %v32
    %v34 = vpop.xlane.xlu0 %33
    %v35 = vsel %vm31, %v30, 0.0
    %36 = vadd.xlane.f32.xlu0 %v35
    %v37 = vpop.xlane.xlu0 %36
    %v38 = vrcp.pop 32.0
    %v39 = vmul.f32 %v34, %v38
    %v40 = vmul.f32 %v37, %v38
    %v41 = vsub.f32 %v29, %v39
    %v42 = vsub.f32 %v30, %v40
    %v43 = vmul.f32 %v41, %v41
    %v44 = vmul.f32 %v42, %v42
    %v45 = vsel %vm31, %v43, 0.0
    %46 = vadd.xlane.f32.xlu0 %v45
    %v47 = vpop.xlane.xlu0 %46
    %v48 = vsel %vm31, %v44, 0.0
    %49 = vadd.xlane.f32.xlu0 %v48
    %v50 = vpop.xlane.xlu0 %49
    %v51 = vmul.f32 %v47, %v38
    %v52 = vmul.f32 %v50, %v38
    %v53 = vadd.f32 %v51, 1e-12
    %v54 = vadd.f32 %v52, 1e-12
    %v55 = vrsqrt.pop %v53
    %v56 = vrsqrt.pop %v54
    %v57 = vmul.f32 %v41, %v55
    %v58 = vmul.f32 %v42, %v56
    %v59 = vld [vmem:[%s1] sm:$0x1]
    %v61 = vlaneseq
    %v62 = vshrl.u32 %v61, 7
    %v63 = vsub.s32 0, %v62
    %v64 = vrot.slane %v59, %v63
    %v66 = vmul.f32 %v57, %v64
    %v67 = vmul.f32 %v58, %v64
    %v68 = vld [vmem:[%s2] sm:$0x1]
    %v70 = vlaneseq
    %v71 = vshrl.u32 %v70, 7
    %v72 = vsub.s32 0, %v71
    %v73 = vrot.slane %v68, %v72
    %v75 = vadd.f32 %v66, %v73
    %v76 = vadd.f32 %v67, %v73
    %v77 = vpack.c.bf16 %v76, %v75
    %v79 = vunpack.c.l.b16 %v77
    %v80 = vunpack.c.h.b16 %v77
    %v81 = vpack.c.b16 %v79, %v79
    %v82 = vpack.c.b16 %v80, %v80
    %vm85 = vcmask 257024
    %86 = vst.msk [vmem:[#allocation5] sm:$0xf] %vm85, %v81
    %87 = vst.msk [vmem:[#allocation5 + $0x4] sm:$0xf] %vm85, %v82
    // Predicated region
    $region18: #{tpu_custom_call.1} parent=1 // pred_check
      _
    $region19: #{tpu_custom_call.1} parent=1 // pred_check_branch
      %89 = sbr.rel (0) target = $region21
    $region20: #{tpu_custom_call.1} parent=1 // pred_region
      %s91 = ssub.s32 128, 128
      %92 = vsyncadd [#allocation4], %s91
      %s93 = sshll.u32 [#allocation5], 4
      %s94 = int_to_ptr.vmem [resolvable:$true] %s93
      %99 = dma.vmem_to_hbm [thread:$0]  %s94, 128, %s3, [#allocation4], 64, 64, 4
    $region21: #{tpu_custom_call.1} parent=1 // pred_fallthru
      _
    // Predicated region
    $region22: #{tpu_custom_call.1} parent=1 // pred_check
      _
    $region23: #{tpu_custom_call.1} parent=1 // pred_check_branch
      %101 = sbr.rel (0) target = $region25
    $region24: #{tpu_custom_call.1} parent=1 // pred_region
      %102 = dma.done [#allocation4], 128
    $region25: #{tpu_custom_call.1} parent=1 // pred_fallthru
      _
    %103 = vsyncpa [#allocation3], 1
    %104 = vsyncpa [#allocation4], 1

</llo_original>
